<compile_context>
chip_gen: v6e
topology: v6e:2x2x1
jax: 0.10.0
libtpu: 0.0.40
codegen_flags: <defaults>
</compile_context>

<pallas_src>
import numpy as np
import jax
import jax.numpy as jnp
from jax import lax
from jax.experimental import pallas as pl
from jax.experimental.pallas import tpu as pltpu  # noqa: F401  (TPU backend)

LANES = 128  # lane width of one vreg row


def _make_kernel(n_present):
    """Build the kernel with the presence mask baked in as a constant."""

    def kernel(in_ref, out_ref, tot_ref):
        # in_ref : (2, LANES) f32   row 0 = losses (padded), row 1 = log_w (padded)
        # out_ref: (2, LANES) f32   row 0 = masked weighted loss, row 1 = masked weight
        # tot_ref: (1, 1)     f32   total_loss = sum over live lanes of weighted
        losses = in_ref[0:1, :]
        log_w = in_ref[1:2, :]

        # compile-time presence mask: first n_present lanes are live
        mask = (lax.broadcasted_iota(jnp.int32, (1, LANES), 1)
                < n_present).astype(jnp.float32)

        # weight = exp(log_w);  loss/(2*w^2) + log(w) == loss*0.5*exp(-2*log_w) + log_w
        weight = jnp.exp(log_w)
        weighted = (losses * (0.5 * jnp.exp(-2.0 * log_w)) + log_w) * mask

        # one full-block store instead of two masked sub-sublane stores
        out_ref[...] = jnp.concatenate([weighted, weight * mask], axis=0)
        # total_loss folded into the kernel (pad lanes are already zero)
        tot_ref[...] = jnp.sum(weighted, axis=-1, keepdims=True)

    return kernel


def _build_pallas_call(n_present):
    return pl.pallas_call(
        _make_kernel(n_present),
        out_shape=(jax.ShapeDtypeStruct((2, LANES), jnp.float32),
                   jax.ShapeDtypeStruct((1, 1), jnp.float32)),
        in_specs=[pl.BlockSpec((2, LANES), lambda: (0, 0))],
        out_specs=(pl.BlockSpec((2, LANES), lambda: (0, 0)),
                   pl.BlockSpec((1, 1), lambda: (0, 0))),
    )


class MultiTaskLossPallas:
    """JAX/Pallas port of the PyTorch MultiTaskLoss forward pass."""

    def __init__(self, task_names, initial_weights=None):
        self.task_names = list(task_names)
        self.num_tasks = len(self.task_names)
        if initial_weights is None:
            initial_weights = {name: 1.0 for name in self.task_names}
        # parameter: log of the initial weights (matches nn.Parameter(log(w0)))
        # TODO(synk): log_weights is a plain array here (forward-only); training of
        # the weights must be wired up by the surrounding optimizer.
        self.log_weights = jnp.asarray(
            np.log(np.array([initial_weights[n] for n in self.task_names],
                            dtype=np.float32)))
        # one compiled pack -> kernel -> unpack function per presence pattern
        self._fn_cache = {}

    def _build_fn(self, present):
        n = len(present)
        assert n <= LANES, f"too many present tasks ({n}) for one {LANES}-lane row"
        present_idx = np.asarray(present, dtype=np.int32)
        kernel_call = _build_pallas_call(n)

        @jax.jit
        def fn(log_weights, *loss_scalars):
            # stack + pad fuse with the rest of the packing inside this one jit
            losses_vec = jnp.stack(
                [jnp.asarray(v, jnp.float32).reshape(()) for v in loss_scalars])
            logw_sel = log_weights[present_idx]          # constant-index gather
            packed = jnp.stack([jnp.pad(losses_vec, (0, LANES - n)),
                                jnp.pad(logw_sel, (0, LANES - n))])  # (2, LANES)

            out, tot = kernel_call(packed)
            # three outputs total: (n,), (n,), scalar
            return out[0, :n], out[1, :n], tot[0, 0]

        return fn

    def __call__(self, task_losses):
        present = tuple(i for i, name in enumerate(self.task_names)
                        if name in task_losses)
        if not present:
            return {'total_loss': jnp.float32(0.0)}
        if present not in self._fn_cache:
            self._fn_cache[present] = self._build_fn(present)

        loss_vals = tuple(task_losses[self.task_names[i]] for i in present)
        weighted_vec, weight_vec, total = self._fn_cache[present](
            self.log_weights, *loss_vals)

        result = {}
        for j, i in enumerate(present):
            name = self.task_names[i]
            result[f'weighted_{name}'] = weighted_vec[j]
            result[f'weight_{name}'] = weight_vec[j]
        result['total_loss'] = total
        return result


if __name__ == "__main__":
    task_names = ["detection", "segmentation", "depth", "classification"]
    initial_weights = {"detection": 1.0, "segmentation": 2.0,
                       "depth": 0.5, "classification": 1.5}

    module = MultiTaskLossPallas(task_names, initial_weights)

    # deterministic example task losses (scalars) from small tensors
    key = jax.random.PRNGKey(0)
    keys = jax.random.split(key, len(task_names))
    task_losses = {}
    for k, name in zip(keys, task_names):
        x = jax.random.normal(k, (2, 4, 16, 16), dtype=jnp.float32)
        task_losses[name] = jnp.mean(x * x)

    result = module(task_losses)
    jax.block_until_ready(result)

    # sanity check against a plain reference of the PyTorch formulation
    ref_total = 0.0
    for i, name in enumerate(task_names):
        w = float(np.exp(float(module.log_weights[i])))
        wl = float(task_losses[name]) / (2.0 * w ** 2) + float(np.log(w))
        ref_total += wl
        assert np.allclose(float(result[f'weighted_{name}']), wl,
                           rtol=1e-4, atol=1e-6)
        assert np.allclose(float(result[f'weight_{name}']), w,
                           rtol=1e-4, atol=1e-6)
    assert np.allclose(float(result['total_loss']), ref_total,
                       rtol=1e-4, atol=1e-6)

    print("KERNEL_OK")
</pallas_src>

<mosaic_0001>
module attributes {stable_mosaic.version = 11 : i64} {
  func.func @kernel(%arg0: memref<2x128xf32, #tpu.memory_space<vmem>>, %arg1: memref<2x128xf32, #tpu.memory_space<vmem>>, %arg2: memref<1x1xf32, #tpu.memory_space<vmem>>) attributes {dimension_semantics = [], scalar_prefetch = 0 : i64, scratch_operands = 0 : i64, tpu.core_type = #tpu.core_type<tc>} {
    %c0 = arith.constant 0 : index
    %c0_0 = arith.constant 0 : index
    %0 = vector.load %arg0[%c0, %c0_0] : memref<2x128xf32, #tpu.memory_space<vmem>>, vector<1x128xf32>
    %c1 = arith.constant 1 : index
    %c0_1 = arith.constant 0 : index
    %1 = vector.load %arg0[%c1, %c0_1] : memref<2x128xf32, #tpu.memory_space<vmem>>, vector<1x128xf32>
    %2 = tpu.iota {dimensions = array<i32: 1>} : vector<1x128xi32>
    %c4_i32 = arith.constant 4 : i32
    %3 = vector.broadcast %c4_i32 : i32 to vector<1x128xi32>
    %4 = arith.cmpi slt, %2, %3 : vector<1x128xi32>
    %5 = arith.extui %4 : vector<1x128xi1> to vector<1x128xi32>
    %6 = arith.sitofp %5 : vector<1x128xi32> to vector<1x128xf32>
    %7 = math.exp %1 : vector<1x128xf32>
    %cst = arith.constant -2.000000e+00 : f32
    %8 = vector.broadcast %cst : f32 to vector<1x128xf32>
    %9 = arith.mulf %8, %1 : vector<1x128xf32>
    %10 = math.exp %9 : vector<1x128xf32>
    %cst_2 = arith.constant 5.000000e-01 : f32
    %11 = vector.broadcast %cst_2 : f32 to vector<1x128xf32>
    %12 = arith.mulf %11, %10 : vector<1x128xf32>
    %13 = arith.mulf %0, %12 : vector<1x128xf32>
    %14 = arith.addf %13, %1 : vector<1x128xf32>
    %15 = arith.mulf %14, %6 : vector<1x128xf32>
    %16 = arith.mulf %7, %6 : vector<1x128xf32>
    %17 = tpu.concatenate %15, %16 in 0 : vector<1x128xf32>, vector<1x128xf32> -> vector<2x128xf32>
    %c0_3 = arith.constant 0 : index
    %c0_4 = arith.constant 0 : index
    %18 = vector.load %arg1[%c0_3, %c0_4] : memref<2x128xf32, #tpu.memory_space<vmem>>, vector<2x128xf32>
    tpu.vector_store %arg1[%c0_3, %c0_4], %17 {strides = array<i32>} : memref<2x128xf32, #tpu.memory_space<vmem>>, vector<2x128xf32>,
    %cst_5 = arith.constant dense<0.000000e+00> : vector<1xf32>
    %19 = vector.multi_reduction <add>, %15, %cst_5 [1] : vector<1x128xf32> to vector<1xf32>
    %20 = vector.shape_cast %19 : vector<1xf32> to vector<1x1xf32>
    %c0_6 = arith.constant 0 : index
    %c0_7 = arith.constant 0 : index
    %21 = vector.load %arg2[%c0_6, %c0_7] : memref<1x1xf32, #tpu.memory_space<vmem>>, vector<1x1xf32>
    tpu.vector_store %arg2[%c0_6, %c0_7], %20 {strides = array<i32>} : memref<1x1xf32, #tpu.memory_space<vmem>>, vector<1x1xf32>,
    return
  }
}

</mosaic_0001>

<llo_original>
// kernel: fn.1
$region0: #{fn.1}
  #allocation0 [shape = 'u32[]', space=smem, size = 0x4, offset = 0x4, fixed_abs, tag = 'smem constant byte address 0x4 - core index']
  #allocation1 [shape = 'u32[144,128]{1,0:T(1,128)}', space=vmem, size = 0x12000, scoped, tag = 'internal scratch']
  %s0 = inlined_call_operand.vmem [shape: f32[2,128], index: 0, kind: input, shape index: {}]
  %s1 = inlined_call_operand.vmem [shape: f32[2,128], index: 1, kind: output, shape index: {0}]
  %s2 = inlined_call_operand.hbm [shape: f32[1,1], index: 2, kind: output, shape index: {1}]
  %3 = xla_tuple %s1, %s2
  %s4 = sld [smem:[#allocation0]]
  $region22: #{fn.1} parent=0
    _
  %s6 = ssub.s32 1, %s4
  %s7 = scalar_select 0, %s6, %s4
  $region1: #{fn.1} parent=0
    #allocation2 [shape = 'u8[512]{0}', space=vmem, size = 0x400, scoped, tag = 'output window, operand 1, single buffered']
    #allocation3 [shape = 's32[1]{0}', space=sflag, size = 0x4, scoped, tag = 'scoped memory for fn.1']
    %8 = vsyncpa [#allocation3], 0
    // Predicated region
    $region2: #{fn.1} parent=1 // pred_check
      _
    $region3: #{fn.1} parent=1 // pred_check_branch
      %10 = sbr.rel (0) target = $region5
    $region4: #{fn.1} parent=1 // pred_region
      _
    $region5: #{fn.1} parent=1 // pred_fallthru
      _
    %v11 = vld [vmem:[%s0] sm:$0x1]
    %v12 = vld [vmem:[%s0 + $0x1] sm:$0x1]
    %v13 = vlaneseq
    %v14 = vand.u32 %v13, 127
    %vm15 = vcmp.lt.s32.totalorder %v14, 4
    %v16 = vsel %vm15, 1, 0
    %v17 = vcvt.s32.f32 %v16
    %v18 = vmul.f32 %v12, 1.442695
    %v19 = vpow.pop %v18
    %v20 = vmul.f32 %v12, -2.0
    %v21 = vmul.f32 %v20, 1.442695
    %v22 = vpow.pop %v21
    %v23 = vmul.f32 %v22, 0.5
    %v24 = vmul.f32 %v11, %v23
    %v25 = vadd.f32 %v24, %v12
    %v26 = vmul.f32 %v25, %v17
    %v27 = vmul.f32 %v19, %v17
    %v29 = vrot.slane %v27, 7
    %vm31 = vcmask 1040384
    %v32 = vsel %vm31, %v26, %v29
    %33 = vst [vmem:[%s1] sm:$0x3] %v32
    %v34 = vsel %vm31, %v26, 0.0
    %35 = vadd.xlane.f32.xlu0 %v34
    %v36 = vpop.xlane.xlu0 %35
    %vm37 = vcmask 0
    %38 = vst.msk [vmem:[#allocation2] sm:$0x1] %vm37, %v36
    // Predicated region
    $region6: #{fn.1} parent=1 // pred_check
      _
    $region7: #{fn.1} parent=1 // pred_check_branch
      %40 = sbr.rel (0) target = $region9
    $region8: #{fn.1} parent=1 // pred_region
      _
    $region9: #{fn.1} parent=1 // pred_fallthru
      _
    // Predicated region
    $region10: #{fn.1} parent=1 // pred_check
      _
    $region11: #{fn.1} parent=1 // pred_check_branch
      %42 = sbr.rel (0) target = $region13
    $region12: #{fn.1} parent=1 // pred_region
      %s44 = ssub.s32 16, 16
      %45 = vsyncadd [#allocation3], %s44
      %s47 = sshll.u32 [#allocation2], 4
      %s48 = int_to_ptr.vmem [resolvable:$true] %s47
      %50 = dma.vmem_to_hbm [thread:$0]  %s48, 16, %s2, [#allocation3]
    $region13: #{fn.1} parent=1 // pred_fallthru
      _
    // Predicated region
    $region14: #{fn.1} parent=1 // pred_check
      _
    $region15: #{fn.1} parent=1 // pred_check_branch
      %52 = sbr.rel (0) target = $region17
    $region16: #{fn.1} parent=1 // pred_region
      _
    $region17: #{fn.1} parent=1 // pred_fallthru
      _
    // Predicated region
    $region18: #{fn.1} parent=1 // pred_check
      _
    $region19: #{fn.1} parent=1 // pred_check_branch
      %54 = sbr.rel (0) target = $region21
    $region20: #{fn.1} parent=1 // pred_region
      %55 = dma.done [#allocation3], 16
    $region21: #{fn.1} parent=1 // pred_fallthru
      _
    %56 = vsyncpa [#allocation3], 1

</llo_original>
